<compile_context>
chip_gen: v7x
topology: tpu7x:2x2x1
jax: 0.10.0
libtpu: 0.0.40
codegen_flags: <defaults>
</compile_context>

<pallas_src>
import math

import jax
import jax.numpy as jnp
from jax.experimental import pallas as pl
from jax.experimental.pallas import tpu as pltpu


def _round_up(x, m):
    return (x + m - 1) // m * m


def _device_config():
    """Generation-tuned tile sizes and VMEM budget cap."""
    kind = ""
    try:
        kind = jax.devices()[0].device_kind.lower()
    except Exception:
        pass
    if "v7" in kind:
        # v7x: 64 MiB physical VMEM per TC; ~3.2 TB/s HBM -> ridge ~310 fl/B.
        return dict(tm=1024, tn=1024, tk=512, vmem_cap=48 << 20)
    if "v6" in kind:
        # v6e: 128 MiB VMEM; highest ridge (~680 fl/B) -> largest tiles.
        return dict(tm=1536, tn=1536, tk=512, vmem_cap=100 << 20)
    if "v5" in kind and ("lite" in kind or "v5e" in kind):
        # v5e: ridge ~240 fl/B -> 512-class tiles are already compute-bound.
        # TODO(synk): add pipeline_mode=pl.Buffered(3) on x / W.T if xprof
        # shows an exposed DMA tail on v5e.
        return dict(tm=512, tn=512, tk=512, vmem_cap=100 << 20)
    # Unknown generation: clears v5e/v7x ridges and fits 64 MiB VMEM safely.
    return dict(tm=1024, tn=1024, tk=512, vmem_cap=48 << 20)


def _qlora_kernel(x_ref, wt_ref, xa_ref, b_ref, bias_ref, o_ref, acc_ref):
    """Produces one (tm, tn) output tile; grid axis 2 loops over K in tk chunks.

    acc_ref: (tm, tn) f32 base-GEMM accumulator, resident across the k axis.
    The LoRA term uses the precomputed XA = x @ A input (hoisted out of the
    k loop) and is applied once in the k==last epilogue.
    """
    k = pl.program_id(2)

    @pl.when(k == 0)
    def _():
        acc_ref[...] = jnp.zeros_like(acc_ref)

    acc_ref[...] += jnp.dot(x_ref[...], wt_ref[...],
                            preferred_element_type=jnp.float32)

    @pl.when(k == pl.num_programs(2) - 1)
    def _():
        # scaling is already folded into b_ref (done once at weight-prep time).
        lora = jnp.dot(xa_ref[...], b_ref[...],
                       preferred_element_type=jnp.float32)
        o_ref[...] = (acc_ref[...] + bias_ref[...] + lora).astype(o_ref.dtype)


def prepare_qlora_weights(weight, bias, lora_A, lora_B, *,
                          lora_alpha=8, use_rslora=True,
                          compute_dtype=jnp.bfloat16, tn=None, tk=None):
    """One-time (outside the hot path) transpose / cast / pad / scaling fold.

    weight: [out, in] (PyTorch convention), bias: [out] or None,
    lora_A: [in, rank], lora_B: [rank, out].

    Must be re-run whenever A / B / alpha change (forward-only kernel).
    # TODO(synk): for frozen serving, optionally fold scaling*A@B into W here
    # and drop the LoRA branch entirely (plain bias-epilogue GEMM).
    """
    cfg = _device_config()
    tn = cfg["tn"] if tn is None else tn
    tk = cfg["tk"] if tk is None else tk

    out_features, in_features = weight.shape
    rank = lora_A.shape[1]
    scaling = (lora_alpha / math.sqrt(rank)) if use_rslora else (lora_alpha / rank)

    tn_eff = min(tn, _round_up(out_features, 128))
    tk_eff = min(tk, _round_up(in_features, 128))
    Np = _round_up(out_features, tn_eff)       # lane-dense output (128-multiple)
    Kp = _round_up(in_features, tk_eff)
    rank_p = _round_up(rank, 128)              # lane-dense XA / B; same MXU cost

    wt = jnp.zeros((Kp, Np), compute_dtype)
    wt = wt.at[:in_features, :out_features].set(weight.T.astype(compute_dtype))

    a_p = jnp.zeros((Kp, rank_p), compute_dtype)
    a_p = a_p.at[:in_features, :rank].set(lora_A.astype(compute_dtype))

    b_p = jnp.zeros((rank_p, Np), compute_dtype)
    b_p = b_p.at[:rank, :out_features].set((lora_B * scaling).astype(compute_dtype))

    bias_p = jnp.zeros((1, Np), jnp.float32)
    if bias is not None:
        bias_p = bias_p.at[0, :out_features].set(bias.astype(jnp.float32))

    return dict(wt=wt, a=a_p, b=b_p, bias=bias_p,
                in_features=in_features, out_features=out_features,
                rank_p=rank_p, tn=tn_eff, tk=tk_eff)


def qlora_linear_forward(x, params, *, tm=None, out_dtype=None):
    """x: [..., in_features]; params from prepare_qlora_weights().

    out_dtype defaults to the compute dtype (bf16) to halve HBM writeback and
    the output double-buffer; pass out_dtype=x.dtype for nn.Linear-exact dtype.
    """
    cfg = _device_config()
    tm = cfg["tm"] if tm is None else tm

    wt, a_p, b_p, bias_p = params["wt"], params["a"], params["b"], params["bias"]
    in_features = params["in_features"]
    out_features = params["out_features"]
    rank_p = params["rank_p"]
    tn, tk = params["tn"], params["tk"]
    Kp, Np = wt.shape
    compute_dtype = wt.dtype
    out_dtype = compute_dtype if out_dtype is None else out_dtype

    # TODO(synk): lora_dropout with p>0 (torch stateful RNG) not implemented;
    # the module default p=0 is the identity path reproduced here.

    lead_shape = x.shape[:-1]
    x2d = x.reshape(-1, in_features)
    M = x2d.shape[0]
    tm_eff = min(tm, _round_up(M, 128))
    Mp = _round_up(M, tm_eff)

    # Single fused cast+pad of x; skipped entirely when already bf16/aligned.
    if (Mp, Kp) == x2d.shape:
        xk = x2d if x2d.dtype == compute_dtype else x2d.astype(compute_dtype)
    else:
        xk = jnp.pad(x2d.astype(compute_dtype),
                     ((0, Mp - M), (0, Kp - in_features)))

    # Hoisted LoRA first stage: XA = x @ A (M*K*r flops, <1% of the base GEMM),
    # bf16 inputs / f32 accumulation, rounded to bf16 for the epilogue @B.
    xa = jnp.dot(xk, a_p, preferred_element_type=jnp.float32).astype(compute_dtype)

    grid = (Mp // tm_eff, Np // tn, Kp // tk)

    # Explicit VMEM budget: double-buffered operands + f32 accumulator with
    # headroom, capped per-generation (v7x physical VMEM is only 64 MiB/TC).
    isz = jnp.dtype(compute_dtype).itemsize
    osz = jnp.dtype(out_dtype).itemsize
    est = (2 * (tm_eff * tk + tk * tn + tm_eff * rank_p + rank_p * tn) * isz
           + 2 * tn * 4
           + 2 * tm_eff * tn * osz
           + tm_eff * tn * 4)
    vmem_limit = int(min(max(2 * est + (8 << 20), 32 << 20), cfg["vmem_cap"]))

    out_padded = pl.pallas_call(
        _qlora_kernel,
        out_shape=jax.ShapeDtypeStruct((Mp, Np), out_dtype),
        grid_spec=pltpu.PrefetchScalarGridSpec(
            num_scalar_prefetch=0,
            grid=grid,
            in_specs=[
                pl.BlockSpec((tm_eff, tk), lambda i, j, k: (i, k)),      # x
                pl.BlockSpec((tk, tn), lambda i, j, k: (k, j)),          # W.T
                pl.BlockSpec((tm_eff, rank_p), lambda i, j, k: (i, 0)),  # x @ A
                pl.BlockSpec((rank_p, tn), lambda i, j, k: (0, j)),      # B*scale
                pl.BlockSpec((1, tn), lambda i, j, k: (0, j)),           # bias
            ],
            out_specs=pl.BlockSpec((tm_eff, tn), lambda i, j, k: (i, j)),
            scratch_shapes=[
                pltpu.VMEM((tm_eff, tn), jnp.float32),   # base-GEMM accumulator
            ],
        ),
        compiler_params=pltpu.CompilerParams(
            dimension_semantics=("parallel", "parallel", "arbitrary"),
            vmem_limit_bytes=vmem_limit,
        ),
    )(xk, wt, xa, b_p, bias_p)

    out2d = out_padded[:M, :out_features]
    return out2d.reshape(*lead_shape, out_features)


def _kaiming_uniform(key, shape, a=math.sqrt(5)):
    # torch.nn.init.kaiming_uniform_ on a 2D tensor: fan_in = shape[1].
    fan_in = shape[1]
    gain = math.sqrt(2.0 / (1.0 + a * a))
    bound = gain * math.sqrt(3.0 / fan_in)
    return jax.random.uniform(key, shape, jnp.float32, -bound, bound)


if __name__ == "__main__":
    # Small shapes, with explicit small tiles so every grid axis takes >= 2
    # steps (grid = (2, 2, 2)), exercising init / accumulate / epilogue paths.
    batch, seq = 2, 128
    in_features, out_features, rank = 512, 256, 8
    lora_alpha = 8

    key = jax.random.PRNGKey(0)
    kx, kw, kb, ka, kB = jax.random.split(key, 5)

    x = jax.random.normal(kx, (batch, seq, in_features), jnp.float32)

    # Frozen base nn.Linear params (deterministic, nn.Linear-style init).
    weight = _kaiming_uniform(kw, (out_features, in_features))        # [out, in]
    b_bound = 1.0 / math.sqrt(in_features)
    bias = jax.random.uniform(kb, (out_features,), jnp.float32, -b_bound, b_bound)

    # LoRA params. The module inits lora_B to zeros; small random values here
    # so the low-rank branch is actually exercised numerically.
    lora_A = _kaiming_uniform(ka, (in_features, rank))                # [in, rank]
    lora_B = 0.02 * jax.random.normal(kB, (rank, out_features), jnp.float32)

    params = prepare_qlora_weights(weight, bias, lora_A, lora_B,
                                   lora_alpha=lora_alpha, use_rslora=True,
                                   compute_dtype=jnp.bfloat16, tn=128, tk=256)
    out = qlora_linear_forward(x, params, tm=128)     # grid = (2, 2, 2)
    out = jax.block_until_ready(out)

    # Reference with the same bf16 rounding of MXU inputs, f32 accumulation.
    scaling = lora_alpha / math.sqrt(rank)
    f32 = jnp.float32
    xb = x.astype(jnp.bfloat16).astype(f32)
    wb = weight.astype(jnp.bfloat16).astype(f32)
    ab = lora_A.astype(jnp.bfloat16).astype(f32)
    bb = (lora_B * scaling).astype(jnp.bfloat16).astype(f32)
    base = jnp.einsum("bsi,oi->bso", xb, wb) + bias
    xa = jnp.einsum("bsi,ir->bsr", xb, ab)
    lora = jnp.einsum("bsr,ro->bso", xa.astype(jnp.bfloat16).astype(f32), bb)
    ref = base + lora

    assert out.shape == (batch, seq, out_features)
    assert out.dtype == jnp.bfloat16                  # perf-default output dtype
    err = float(jnp.max(jnp.abs(out.astype(f32) - ref)))
    assert err < 2e-2, err                            # bf16-output rounding bound

    print("KERNEL_OK")
</pallas_src>

<mosaic_0001>
module attributes {stable_mosaic.version = 11 : i64} {
  func.func @_qlora_kernel(%arg0: i32, %arg1: i32, %arg2: i32, %arg3: memref<128x256xbf16, #tpu.memory_space<vmem>>, %arg4: memref<256x128xbf16, #tpu.memory_space<vmem>>, %arg5: memref<128x128xbf16, #tpu.memory_space<vmem>>, %arg6: memref<128x128xbf16, #tpu.memory_space<vmem>>, %arg7: memref<1x128xf32, #tpu.memory_space<vmem>>, %arg8: memref<128x128xbf16, #tpu.memory_space<vmem>>, %arg9: memref<128x128xf32, #tpu.memory_space<vmem>>) attributes {dimension_semantics = [#tpu.dimension_semantics<parallel>, #tpu.dimension_semantics<parallel>, #tpu.dimension_semantics<arbitrary>], iteration_bounds = array<i64: 2, 2, 2>, scalar_prefetch = 0 : i64, scratch_operands = 1 : i64, tpu.core_type = #tpu.core_type<tc>, window_params = [{transform_indices = @transform_0, window_bounds = array<i64: 128, 256>}, {transform_indices = @transform_1, window_bounds = array<i64: 256, 128>}, {transform_indices = @transform_2, window_bounds = array<i64: 128, 128>}, {transform_indices = @transform_3, window_bounds = array<i64: 128, 128>}, {transform_indices = @transform_4, window_bounds = array<i64: 1, 128>}, {transform_indices = @transform_5, window_bounds = array<i64: 128, 128>}]} {
    %c0_i32 = arith.constant 0 : i32
    %0 = arith.cmpi eq, %arg2, %c0_i32 : i32
    %1 = arith.extui %0 : i1 to i32
    %c0_i32_0 = arith.constant 0 : i32
    %2 = arith.cmpi ne, %1, %c0_i32_0 : i32
    scf.if %2 {
      %cst_9 = arith.constant 0.000000e+00 : f32
      %12 = vector.broadcast %cst_9 : f32 to vector<128x128xf32>
      %c0_10 = arith.constant 0 : index
      %c0_11 = arith.constant 0 : index
      %13 = vector.load %arg9[%c0_10, %c0_11] : memref<128x128xf32, #tpu.memory_space<vmem>>, vector<128x128xf32>
      tpu.vector_store %arg9[%c0_10, %c0_11], %12 {strides = array<i32>} : memref<128x128xf32, #tpu.memory_space<vmem>>, vector<128x128xf32>,
    } else {
    }
    %c0 = arith.constant 0 : index
    %c0_1 = arith.constant 0 : index
    %3 = vector.load %arg9[%c0, %c0_1] : memref<128x128xf32, #tpu.memory_space<vmem>>, vector<128x128xf32>
    %c0_2 = arith.constant 0 : index
    %c0_3 = arith.constant 0 : index
    %4 = vector.load %arg3[%c0_2, %c0_3] : memref<128x256xbf16, #tpu.memory_space<vmem>>, vector<128x256xbf16>
    %c0_4 = arith.constant 0 : index
    %c0_5 = arith.constant 0 : index
    %5 = vector.load %arg4[%c0_4, %c0_5] : memref<256x128xbf16, #tpu.memory_space<vmem>>, vector<256x128xbf16>
    %cst = arith.constant dense<0.000000e+00> : vector<128x128xf32>
    %6 = tpu.matmul %4, %5, %cst {dimension_numbers = #tpu.dot_dimension_numbers<[1], [0], [0], [1], [0, 0, 1, 1], [], []>} : vector<128x256xbf16>, vector<256x128xbf16>, vector<128x128xf32> -> vector<128x128xf32>
    %7 = arith.addf %3, %6 : vector<128x128xf32>
    %c0_6 = arith.constant 0 : index
    %c0_7 = arith.constant 0 : index
    %8 = vector.load %arg9[%c0_6, %c0_7] : memref<128x128xf32, #tpu.memory_space<vmem>>, vector<128x128xf32>
    tpu.vector_store %arg9[%c0_6, %c0_7], %7 {strides = array<i32>} : memref<128x128xf32, #tpu.memory_space<vmem>>, vector<128x128xf32>,
    %c1_i32 = arith.constant 1 : i32
    %9 = arith.cmpi eq, %arg2, %c1_i32 : i32
    %10 = arith.extui %9 : i1 to i32
    %c0_i32_8 = arith.constant 0 : i32
    %11 = arith.cmpi ne, %10, %c0_i32_8 : i32
    scf.if %11 {
      %c0_9 = arith.constant 0 : index
      %c0_10 = arith.constant 0 : index
      %12 = vector.load %arg5[%c0_9, %c0_10] : memref<128x128xbf16, #tpu.memory_space<vmem>>, vector<128x128xbf16>
      %c0_11 = arith.constant 0 : index
      %c0_12 = arith.constant 0 : index
      %13 = vector.load %arg6[%c0_11, %c0_12] : memref<128x128xbf16, #tpu.memory_space<vmem>>, vector<128x128xbf16>
      %cst_13 = arith.constant dense<0.000000e+00> : vector<128x128xf32>
      %14 = tpu.matmul %12, %13, %cst_13 {dimension_numbers = #tpu.dot_dimension_numbers<[1], [0], [0], [1], [0, 0, 1, 1], [], []>} : vector<128x128xbf16>, vector<128x128xbf16>, vector<128x128xf32> -> vector<128x128xf32>
      %c0_14 = arith.constant 0 : index
      %c0_15 = arith.constant 0 : index
      %15 = vector.load %arg9[%c0_14, %c0_15] : memref<128x128xf32, #tpu.memory_space<vmem>>, vector<128x128xf32>
      %c0_16 = arith.constant 0 : index
      %c0_17 = arith.constant 0 : index
      %16 = vector.load %arg7[%c0_16, %c0_17] : memref<1x128xf32, #tpu.memory_space<vmem>>, vector<1x128xf32>
      %17 = vector.broadcast %16 : vector<1x128xf32> to vector<128x128xf32>
      %18 = arith.addf %15, %17 : vector<128x128xf32>
      %19 = arith.addf %18, %14 : vector<128x128xf32>
      %20 = arith.truncf %19 : vector<128x128xf32> to vector<128x128xbf16>
      %c0_18 = arith.constant 0 : index
      %c0_19 = arith.constant 0 : index
      %21 = vector.load %arg8[%c0_18, %c0_19] : memref<128x128xbf16, #tpu.memory_space<vmem>>, vector<128x128xbf16>
      tpu.vector_store %arg8[%c0_18, %c0_19], %20 {strides = array<i32>} : memref<128x128xbf16, #tpu.memory_space<vmem>>, vector<128x128xbf16>,
    } else {
    }
    return
  }
  func.func @transform_0(%arg0: i32, %arg1: i32, %arg2: i32) -> (i32, i32) {
    %c0_i32 = arith.constant 0 : i32
    return %arg0, %arg2 : i32, i32
  }
  func.func @transform_1(%arg0: i32, %arg1: i32, %arg2: i32) -> (i32, i32) {
    %c0_i32 = arith.constant 0 : i32
    return %arg2, %arg1 : i32, i32
  }
  func.func @transform_2(%arg0: i32, %arg1: i32, %arg2: i32) -> (i32, i32) {
    %c0_i32 = arith.constant 0 : i32
    %c0_i32_0 = arith.constant 0 : i32
    return %arg0, %c0_i32 : i32, i32
  }
  func.func @transform_3(%arg0: i32, %arg1: i32, %arg2: i32) -> (i32, i32) {
    %c0_i32 = arith.constant 0 : i32
    %c0_i32_0 = arith.constant 0 : i32
    return %c0_i32, %arg1 : i32, i32
  }
  func.func @transform_4(%arg0: i32, %arg1: i32, %arg2: i32) -> (i32, i32) {
    %c0_i32 = arith.constant 0 : i32
    %c0_i32_0 = arith.constant 0 : i32
    return %c0_i32, %arg1 : i32, i32
  }
  func.func @transform_5(%arg0: i32, %arg1: i32, %arg2: i32) -> (i32, i32) {
    %c0_i32 = arith.constant 0 : i32
    return %arg0, %arg1 : i32, i32
  }
}

</mosaic_0001>

<llo_original>
// kernel: tpu_custom_call.1
$region0: #{tpu_custom_call.1}
  #allocation0 [shape = 'u32[]', space=smem, size = 0x4, offset = 0x4, fixed_abs, tag = 'smem constant byte address 0x4 - core index']
  #allocation1 [shape = 'u32[144,128]{1,0:T(1,128)}', space=vmem, size = 0x12000, scoped, tag = 'internal scratch']
  #allocation2 [shape = 'f32[128,128]{1,0:T(8,128)}', space=vmem, size = 0x10000, scoped, tag = 'scratch operand']
  %s0 = inlined_call_operand.hbm [shape: bf16[256,512], index: 0, kind: input, shape index: {}]
  %s1 = inlined_call_operand.hbm [shape: bf16[512,256], index: 1, kind: input, shape index: {}]
  %s2 = inlined_call_operand.hbm [shape: bf16[256,128], index: 2, kind: input, shape index: {}]
  %s3 = inlined_call_operand.hbm [shape: bf16[128,256], index: 3, kind: input, shape index: {}]
  %s4 = inlined_call_operand.vmem [shape: f32[1,256], index: 4, kind: input, shape index: {}]
  %s5 = inlined_call_operand.hbm [shape: bf16[256,256], index: 5, kind: output, shape index: {}]
  %s6 = sld [smem:[#allocation0]]
  $region77: #{tpu_custom_call.1} parent=0
    _
  %s8 = ssub.s32 1, %s6
  %s9 = scalar_select 0, %s8, %s6
  $region1: #{tpu_custom_call.1} parent=0
    #allocation3 [shape = 'u8[131072]{0}', space=vmem, size = 0x20000, scoped, tag = 'input window, operand 0']
    #allocation4 [shape = 's32[2]{0}', space=sflag, size = 0x8, scoped, tag = 'scoped memory for tpu_custom_call.1']
    #allocation5 [shape = 's32[2]{0}', space=sflag, size = 0x8, scoped, tag = 'scoped memory for tpu_custom_call.1']
    #allocation6 [shape = 'u8[131072]{0}', space=vmem, size = 0x20000, scoped, tag = 'input window, operand 1']
    #allocation7 [shape = 's32[2]{0}', space=sflag, size = 0x8, scoped, tag = 'scoped memory for tpu_custom_call.1']
    #allocation8 [shape = 'u8[65536]{0}', space=vmem, size = 0x10000, scoped, tag = 'input window, operand 2']
    #allocation9 [shape = 'u8[65536]{0}', space=vmem, size = 0x10000, scoped, tag = 'input window, operand 3']
    #allocation10 [shape = 's32[2]{0}', space=sflag, size = 0x8, scoped, tag = 'scoped memory for tpu_custom_call.1']
    #allocation11 [shape = 'u8[65536]{0}', space=vmem, size = 0x10000, scoped, tag = 'output window, operand 0']
    %10 = vsyncpa [#allocation4], 0
    %s11 = scalar_lea.sflag [#allocation4], 1
    %12 = vsyncpa %s11, 0
    %13 = vsyncpa [#allocation7], 0
    %s14 = scalar_lea.sflag [#allocation7], 1
    %15 = vsyncpa %s14, 0
    %16 = vsyncpa [#allocation10], 0
    %s17 = scalar_lea.sflag [#allocation10], 1
    %18 = vsyncpa %s17, 0
    %19 = vsyncpa [#allocation5], 0
    %s20 = scalar_lea.sflag [#allocation5], 1
    %21 = vsyncpa %s20, 0
    loop: start=0, step=1, limit=10
    $region2: #{tpu_custom_call.1} parent=1 // loop_pre_header
      _
    $region3: #{tpu_custom_call.1} parent=1 // loop_header
      %s23 = sphi 0, %s27
      %p24 = scmp.ge.s32.totalorder %s23, 10
      %s30 = sphi 0, %s49
      %s31 = sphi 0, %s45
      %s32 = sphi 0, %s41
      %s33 = sphi 0, %s30
      %s34 = sphi 0, %s31
      %s35 = sphi 0, %s32
      %s36 = sphi 0, %s33
      %s37 = sphi 0, %s34
      %s38 = sphi 0, %s35
      %s54 = sphi 0, %s56
      %s57 = sphi 0, %s54
      %s58 = sphi 0, %s57
      %s74 = sphi 0, %s58
      %s82 = sphi 0, %s84
      %s85 = sphi 0, %s82
      %s86 = sphi 0, %s85
      %s102 = sphi 0, %s86
      %s108 = sphi 0, %s110
      %s111 = sphi 0, %s108
      %s112 = sphi 0, %s111
      %s128 = sphi 0, %s112
      %s134 = sphi 0, %s136
      %s137 = sphi 0, %s134
      %s138 = sphi 0, %s137
      %s154 = sphi 0, %s138
      %s160 = sphi 0, %s162
      %s163 = sphi 0, %s160
      %s164 = sphi 0, %s163
      %s180 = sphi 0, %s164
      %s188 = sphi 0, %s190
      %s191 = sphi 0, %s188
      %s192 = sphi 0, %s191
      %s208 = sphi 0, %s192
    $region4: #{tpu_custom_call.1} parent=1 // loop_header_branch
      %26 = sbr.rel (%p24) target = $region8
    $region5: #{tpu_custom_call.1} parent=1 // loop_body
      %s28 = ssub.s32 %s23, 1
      %s29 = ssub.s32 %s23, 2
      %s39 = sadd.s32 1, %s32
      %p40 = scmp.ge.s32.totalorder %s39, 2
      %s41 = scalar_select %p40, 0, %s39
      %s42 = sadd.s32 1, %s31
      %s43 = scalar_select %p40, %s42, %s31
      %p44 = scmp.ge.s32.totalorder %s43, 2
      %s45 = scalar_select %p44, 0, %s43
      %s46 = sadd.s32 1, %s30
      %s47 = scalar_select %p44, %s46, %s30
      %p48 = scmp.ge.s32.totalorder %s47, 2
      %s49 = scalar_select %p48, 0, %s47
      %s50 = ssub.s32 %s30, %s49
      %s51 = ssub.s32 %s32, %s41
      %s52 = sor.u32 %s50, %s51
      %p53 = scmp.eq.s32.totalorder %s52, 0
      %s55 = sadd.s32 %s54, 1
      %s56 = scalar_select %p53, %s54, %s55
      %p59 = pneg %p53
      %p60 = scmp.eq.s32.totalorder %s23, 7
      %p61 = por %p59, %p60
      %p62 = scmp.ne.s32.totalorder %s54, %s57
      %p63 = scmp.eq.s32.totalorder %s23, 0
      %p64 = por %p62, %p63
      %p65 = scmp.ne.s32.totalorder %s54, %s57
      %p66 = scmp.eq.s32.totalorder %s28, 7
      %p67 = por %p65, %p66
      %p68 = scmp.ne.s32.totalorder %s57, %s58
      %p69 = scmp.eq.s32.totalorder %s28, 0
      %p70 = por %p68, %p69
      %p71 = scmp.ne.s32.totalorder %s57, %s58
      %p72 = scmp.eq.s32.totalorder %s29, 7
      %p73 = por %p71, %p72
      %p75 = scmp.ne.s32.totalorder %s58, %s74
      %p76 = scmp.eq.s32.totalorder %s29, 0
      %p77 = por %p75, %p76
      %s78 = ssub.s32 %s32, %s41
      %s79 = ssub.s32 %s31, %s45
      %s80 = sor.u32 %s78, %s79
      %p81 = scmp.eq.s32.totalorder %s80, 0
      %s83 = sadd.s32 %s82, 1
      %s84 = scalar_select %p81, %s82, %s83
      %p87 = pneg %p81
      %p88 = scmp.eq.s32.totalorder %s23, 7
      %p89 = por %p87, %p88
      %p90 = scmp.ne.s32.totalorder %s82, %s85
      %p91 = scmp.eq.s32.totalorder %s23, 0
      %p92 = por %p90, %p91
      %p93 = scmp.ne.s32.totalorder %s82, %s85
      %p94 = scmp.eq.s32.totalorder %s28, 7
      %p95 = por %p93, %p94
      %p96 = scmp.ne.s32.totalorder %s85, %s86
      %p97 = scmp.eq.s32.totalorder %s28, 0
      %p98 = por %p96, %p97
      %p99 = scmp.ne.s32.totalorder %s85, %s86
      %p100 = scmp.eq.s32.totalorder %s29, 7
      %p101 = por %p99, %p100
      %p103 = scmp.ne.s32.totalorder %s86, %s102
      %p104 = scmp.eq.s32.totalorder %s29, 0
      %p105 = por %p103, %p104
      %s106 = ssub.s32 %s30, %s49
      %p107 = scmp.eq.s32.totalorder %s106, 0
      %s109 = sadd.s32 %s108, 1
      %s110 = scalar_select %p107, %s108, %s109
      %p113 = pneg %p107
      %p114 = scmp.eq.s32.totalorder %s23, 7
      %p115 = por %p113, %p114
      %p116 = scmp.ne.s32.totalorder %s108, %s111
      %p117 = scmp.eq.s32.totalorder %s23, 0
      %p118 = por %p116, %p117
      %p119 = scmp.ne.s32.totalorder %s108, %s111
      %p120 = scmp.eq.s32.totalorder %s28, 7
      %p121 = por %p119, %p120
      %p122 = scmp.ne.s32.totalorder %s111, %s112
      %p123 = scmp.eq.s32.totalorder %s28, 0
      %p124 = por %p122, %p123
      %p125 = scmp.ne.s32.totalorder %s111, %s112
      %p126 = scmp.eq.s32.totalorder %s29, 7
      %p127 = por %p125, %p126
      %p129 = scmp.ne.s32.totalorder %s112, %s128
      %p130 = scmp.eq.s32.totalorder %s29, 0
      %p131 = por %p129, %p130
      %s132 = ssub.s32 %s31, %s45
      %p133 = scmp.eq.s32.totalorder %s132, 0
      %s135 = sadd.s32 %s134, 1
      %s136 = scalar_select %p133, %s134, %s135
      %p139 = pneg %p133
      %p140 = scmp.eq.s32.totalorder %s23, 7
      %p141 = por %p139, %p140
      %p142 = scmp.ne.s32.totalorder %s134, %s137
      %p143 = scmp.eq.s32.totalorder %s23, 0
      %p144 = por %p142, %p143
      %p145 = scmp.ne.s32.totalorder %s134, %s137
      %p146 = scmp.eq.s32.totalorder %s28, 7
      %p147 = por %p145, %p146
      %p148 = scmp.ne.s32.totalorder %s137, %s138
      %p149 = scmp.eq.s32.totalorder %s28, 0
      %p150 = por %p148, %p149
      %p151 = scmp.ne.s32.totalorder %s137, %s138
      %p152 = scmp.eq.s32.totalorder %s29, 7
      %p153 = por %p151, %p152
      %p155 = scmp.ne.s32.totalorder %s138, %s154
      %p156 = scmp.eq.s32.totalorder %s29, 0
      %p157 = por %p155, %p156
      %s158 = ssub.s32 %s31, %s45
      %p159 = scmp.eq.s32.totalorder %s158, 0
      %s161 = sadd.s32 %s160, 1
      %s162 = scalar_select %p159, %s160, %s161
      %p165 = pneg %p159
      %p166 = scmp.eq.s32.totalorder %s23, 7
      %p167 = por %p165, %p166
      %p168 = scmp.ne.s32.totalorder %s160, %s163
      %p169 = scmp.eq.s32.totalorder %s23, 0
      %p170 = por %p168, %p169
      %p171 = scmp.ne.s32.totalorder %s160, %s163
      %p172 = scmp.eq.s32.totalorder %s28, 7
      %p173 = por %p171, %p172
      %p174 = scmp.ne.s32.totalorder %s163, %s164
      %p175 = scmp.eq.s32.totalorder %s28, 0
      %p176 = por %p174, %p175
      %p177 = scmp.ne.s32.totalorder %s163, %s164
      %p178 = scmp.eq.s32.totalorder %s29, 7
      %p179 = por %p177, %p178
      %p181 = scmp.ne.s32.totalorder %s164, %s180
      %p182 = scmp.eq.s32.totalorder %s29, 0
      %p183 = por %p181, %p182
      %s184 = ssub.s32 %s30, %s49
      %s185 = ssub.s32 %s31, %s45
      %s186 = sor.u32 %s184, %s185
      %p187 = scmp.eq.s32.totalorder %s186, 0
      %s189 = sadd.s32 %s188, 1
      %s190 = scalar_select %p187, %s188, %s189
      %p193 = pneg %p187
      %p194 = scmp.eq.s32.totalorder %s23, 7
      %p195 = por %p193, %p194
      %p196 = scmp.ne.s32.totalorder %s188, %s191
      %p197 = scmp.eq.s32.totalorder %s23, 0
      %p198 = por %p196, %p197
      %p199 = scmp.ne.s32.totalorder %s188, %s191
      %p200 = scmp.eq.s32.totalorder %s28, 7
      %p201 = por %p199, %p200
      %p202 = scmp.ne.s32.totalorder %s191, %s192
      %p203 = scmp.eq.s32.totalorder %s28, 0
      %p204 = por %p202, %p203
      %p205 = scmp.ne.s32.totalorder %s191, %s192
      %p206 = scmp.eq.s32.totalorder %s29, 7
      %p207 = por %p205, %p206
      %p209 = scmp.ne.s32.totalorder %s192, %s208
      %p210 = scmp.eq.s32.totalorder %s29, 0
      %p211 = por %p209, %p210
      %p212 = scmp.le.s32.totalorder 1, %s23
      %p213 = scmp.lt.s32.totalorder %s23, 9
      %p214 = pnand %p212, %p213
      %p215 = pneg %p214
      // Predicated region
      $region9: #{tpu_custom_call.1} parent=5 // pred_check
        _
      $region10: #{tpu_custom_call.1} parent=5 // pred_check_branch
        %217 = sbr.rel (%p214) target = $region12
      $region11: #{tpu_custom_call.1} parent=5 // pred_region
        %s218 = ssub.s32 %s23, 1
      $region12: #{tpu_custom_call.1} parent=5 // pred_fallthru
        _
      %p219 = scmp.lt.s32.totalorder %s23, 8
      // Predicated region
      $region13: #{tpu_custom_call.1} parent=5 // pred_check
        %p220 = pneg %p219
      $region14: #{tpu_custom_call.1} parent=5 // pred_check_branch
        %222 = sbr.rel (%p220) target = $region16
      $region15: #{tpu_custom_call.1} parent=5 // pred_region
        // Predicated region
        $region17: #{tpu_custom_call.1} parent=15 // pred_check
          %p223 = pneg %p64
        $region18: #{tpu_custom_call.1} parent=15 // pred_check_branch
          %225 = sbr.rel (%p223) target = $region20
        $region19: #{tpu_custom_call.1} parent=15 // pred_region
          %s226 = sand.u32 %s54, 1
          %s227 = scalar_lea.sflag [#allocation4], %s226
          %s228 = sand.u32 %s54, 1
          %s229 = smul.addr %s228, 128
          %s230 = scalar_lea.vmem [#allocation3], %s229
          %s231 = smul.u32 16, %s30
          %s232 = smul.u32 2, %s32
          %s234 = ssub.s32 2048, 2048
          %235 = vsyncadd %s227, %s234
          %s236 = smul.addr %s231, 4
          %s237 = sadd.s32 %s232, %s236
          %s238 = smul.addr %s237, 64
          %s239 = scalar_lea.hbm %s0, %s238
          %s240 = sshll.u32 %s230, 4
          %s241 = int_to_ptr.vmem [resolvable:$true] %s240
          %246 = dma.hbm_to_vmem [thread:$0]  %s239, 2048, %s241, %s227, 256, 128, 8
        $region20: #{tpu_custom_call.1} parent=15 // pred_fallthru
          _
        // Predicated region
        $region21: #{tpu_custom_call.1} parent=15 // pred_check
          %p247 = pneg %p92
        $region22: #{tpu_custom_call.1} parent=15 // pred_check_branch
          %249 = sbr.rel (%p247) target = $region24
        $region23: #{tpu_custom_call.1} parent=15 // pred_region
          %s250 = sand.u32 %s23, 1
          %s251 = scalar_lea.sflag [#allocation7], %s250
          %s252 = sand.u32 %s82, 1
          %s253 = smul.addr %s252, 128
          %s254 = scalar_lea.vmem [#allocation6], %s253
          %s255 = smul.u32 32, %s32
          %s257 = ssub.s32 2048, 2048
          %258 = vsyncadd %s251, %s257
          %s259 = smul.addr %s255, 2
          %s260 = sadd.s32 %s31, %s259
          %s261 = smul.addr %s260, 64
          %s262 = scalar_lea.hbm %s1, %s261
          %s263 = sshll.u32 %s254, 4
          %s264 = int_to_ptr.vmem [resolvable:$true] %s263
          %269 = dma.hbm_to_vmem [thread:$0]  %s262, 2048, %s264, %s251, 128, 64, 4
        $region24: #{tpu_custom_call.1} parent=15 // pred_fallthru
          _
        // Predicated region
        $region25: #{tpu_custom_call.1} parent=15 // pred_check
          %p270 = pneg %p118
        $region26: #{tpu_custom_call.1} parent=15 // pred_check_branch
          %272 = sbr.rel (%p270) target = $region28
        $region27: #{tpu_custom_call.1} parent=15 // pred_region
          %s273 = sand.u32 %s23, 1
          %s274 = scalar_lea.sflag [#allocation7], %s273
          %s275 = sand.u32 %s108, 1
          %s276 = smul.addr %s275, 64
          %s277 = scalar_lea.vmem [#allocation8], %s276
          %s278 = smul.u32 16, %s30
          %s280 = ssub.s32 1024, 1024
          %281 = vsyncadd %s274, %s280
          %s282 = smul.addr %s278, 64
          %s283 = scalar_lea.hbm %s2, %s282
          %s284 = sshll.u32 %s277, 4
          %s285 = int_to_ptr.vmem [resolvable:$true] %s284
          %290 = dma.hbm_to_vmem [thread:$0]  %s283, 1024, %s285, %s274, 64, 64, 4
        $region28: #{tpu_custom_call.1} parent=15 // pred_fallthru
          _
        // Predicated region
        $region29: #{tpu_custom_call.1} parent=15 // pred_check
          %p291 = pneg %p144
        $region30: #{tpu_custom_call.1} parent=15 // pred_check_branch
          %293 = sbr.rel (%p291) target = $region32
        $region31: #{tpu_custom_call.1} parent=15 // pred_region
          %s294 = sand.u32 %s134, 1
          %s295 = scalar_lea.sflag [#allocation10], %s294
          %s296 = sand.u32 %s134, 1
          %s297 = smul.addr %s296, 64
          %s298 = scalar_lea.vmem [#allocation9], %s297
          %s300 = ssub.s32 1024, 1024
          %301 = vsyncadd %s295, %s300
          %s302 = smul.addr %s31, 64
          %s303 = scalar_lea.hbm %s3, %s302
          %s304 = sshll.u32 %s298, 4
          %s305 = int_to_ptr.vmem [resolvable:$true] %s304
          %310 = dma.hbm_to_vmem [thread:$0]  %s303, 1024, %s305, %s295, 128, 64, 4
        $region32: #{tpu_custom_call.1} parent=15 // pred_fallthru
          _
        // Predicated region
        $region33: #{tpu_custom_call.1} parent=15 // pred_check
          %p311 = pneg %p170
        $region34: #{tpu_custom_call.1} parent=15 // pred_check_branch
          %313 = sbr.rel (%p311) target = $region36
        $region35: #{tpu_custom_call.1} parent=15 // pred_region
          %p314 = scmp.lt.s32.totalorder %s31, 1
          %s315 = scalar_select %p314, %s31, 1
          %s316 = scalar_lea.vmem %s4, %s315
        $region36: #{tpu_custom_call.1} parent=15 // pred_fallthru
          _
      $region16: #{tpu_custom_call.1} parent=5 // pred_fallthru
        _
      %p317 = scmp.le.s32.totalorder 1, %s23
      %p318 = scmp.lt.s32.totalorder %s23, 9
      %p319 = pnand %p317, %p318
      %p320 = pneg %p319
      // Predicated region
      $region37: #{tpu_custom_call.1} parent=5 // pred_check
        _
      $region38: #{tpu_custom_call.1} parent=5 // pred_check_branch
        %322 = sbr.rel (%p319) target = $region40
      $region39: #{tpu_custom_call.1} parent=5 // pred_region
        %s323 = ssub.s32 %s23, 1
        %s324 = sand.u32 %s57, 1
        %s325 = scalar_lea.sflag [#allocation4], %s324
        %s326 = sand.u32 %s57, 1
        %s327 = smul.addr %s326, 128
        %s328 = scalar_lea.vmem [#allocation3], %s327
        // Predicated region
        $region41: #{tpu_custom_call.1} parent=39 // pred_check
          %p329 = pneg %p70
        $region42: #{tpu_custom_call.1} parent=39 // pred_check_branch
          %331 = sbr.rel (%p329) target = $region44
        $region43: #{tpu_custom_call.1} parent=39 // pred_region
          %332 = dma.done %s325, 2048
        $region44: #{tpu_custom_call.1} parent=39 // pred_fallthru
          _
        %s333 = sand.u32 %s28, 1
        %s334 = scalar_lea.sflag [#allocation7], %s333
        %s335 = sand.u32 %s85, 1
        %s336 = smul.addr %s335, 128
        %s337 = scalar_lea.vmem [#allocation6], %s336
        // Predicated region
        $region45: #{tpu_custom_call.1} parent=39 // pred_check
          %p338 = pneg %p98
        $region46: #{tpu_custom_call.1} parent=39 // pred_check_branch
          %340 = sbr.rel (%p338) target = $region48
        $region47: #{tpu_custom_call.1} parent=39 // pred_region
          %341 = dma.done %s334, 2048
        $region48: #{tpu_custom_call.1} parent=39 // pred_fallthru
          _
        %s342 = sand.u32 %s28, 1
        %s343 = scalar_lea.sflag [#allocation7], %s342
        %s344 = sand.u32 %s111, 1
        %s345 = smul.addr %s344, 64
        %s346 = scalar_lea.vmem [#allocation8], %s345
        // Predicated region
        $region49: #{tpu_custom_call.1} parent=39 // pred_check
          %p347 = pneg %p124
        $region50: #{tpu_custom_call.1} parent=39 // pred_check_branch
          %349 = sbr.rel (%p347) target = $region52
        $region51: #{tpu_custom_call.1} parent=39 // pred_region
          %350 = dma.done %s343, 1024
        $region52: #{tpu_custom_call.1} parent=39 // pred_fallthru
          _
        %s351 = sand.u32 %s137, 1
        %s352 = scalar_lea.sflag [#allocation10], %s351
        %s353 = sand.u32 %s137, 1
        %s354 = smul.addr %s353, 64
        %s355 = scalar_lea.vmem [#allocation9], %s354
        // Predicated region
        $region53: #{tpu_custom_call.1} parent=39 // pred_check
          %p356 = pneg %p150
        $region54: #{tpu_custom_call.1} parent=39 // pred_check_branch
          %358 = sbr.rel (%p356) target = $region56
        $region55: #{tpu_custom_call.1} parent=39 // pred_region
          %359 = dma.done %s352, 1024
        $region56: #{tpu_custom_call.1} parent=39 // pred_fallthru
          _
        %s360 = sand.u32 %s57, 1
        %s361 = scalar_lea.sflag [#allocation4], %s360
        %s362 = sand.u32 %s57, 1
        %s363 = smul.addr %s362, 128
        %s364 = scalar_lea.vmem [#allocation3], %s363
        %p365 = pneg %p70
        %p366 = pneg %p67
        %s367 = sand.u32 %s28, 1
        %s368 = scalar_lea.sflag [#allocation7], %s367
        %s369 = sand.u32 %s85, 1
        %s370 = smul.addr %s369, 128
        %s371 = scalar_lea.vmem [#allocation6], %s370
        %p372 = pneg %p98
        %p373 = pneg %p95
        %s374 = sand.u32 %s28, 1
        %s375 = scalar_lea.sflag [#allocation7], %s374
        %s376 = sand.u32 %s111, 1
        %s377 = smul.addr %s376, 64
        %s378 = scalar_lea.vmem [#allocation8], %s377
        %p379 = pneg %p124
        %p380 = pneg %p121
        %s381 = sand.u32 %s137, 1
        %s382 = scalar_lea.sflag [#allocation10], %s381
        %s383 = sand.u32 %s137, 1
        %s384 = smul.addr %s383, 64
        %s385 = scalar_lea.vmem [#allocation9], %s384
        %p386 = pneg %p150
        %p387 = pneg %p147
        %p388 = scmp.lt.s32.totalorder %s34, 1
        %s389 = scalar_select %p388, %s34, 1
        %s390 = scalar_lea.vmem %s4, %s389
        %p391 = pneg %p176
        %p392 = pneg %p173
        %p393 = pneg %p204
        %p394 = pneg %p201
        %s395 = sand.u32 %s191, 1
        %s396 = scalar_lea.sflag [#allocation5], %s395
        %s397 = sand.u32 %s191, 1
        %s398 = smul.addr %s397, 64
        %s399 = scalar_lea.vmem [#allocation11], %s398
        %s400 = smul.u32 16, %s33
        %s401 = smul.u32 2, %s35
        %s402 = smul.u32 32, %s35
        %s403 = smul.u32 16, %s33
        %p404 = scmp.lt.s32.totalorder %s34, 1
        %s405 = scalar_select %p404, %s34, 1
        %s406 = scalar_lea.vmem %s4, %s405
        %s407 = smul.u32 16, %s33
        %p409 = scmp.eq.s32.totalorder %s35, 0
        // Predicated region
        $region57: #{tpu_custom_call.1} parent=39 // pred_check
          %p410 = pneg %p409
        $region58: #{tpu_custom_call.1} parent=39 // pred_check_branch
          %412 = sbr.rel (%p410) target = $region60
        $region59: #{tpu_custom_call.1} parent=39 // pred_region
          %413 = vst [vmem:[#allocation2] sm:$0xff] 0.0
          %414 = vst [vmem:[#allocation2 + $0x8] sm:$0xff] 0.0
          %415 = vst [vmem:[#allocation2 + $0x10] sm:$0xff] 0.0
          %416 = vst [vmem:[#allocation2 + $0x18] sm:$0xff] 0.0
          %417 = vst [vmem:[#allocation2 + $0x20] sm:$0xff] 0.0
          %418 = vst [vmem:[#allocation2 + $0x28] sm:$0xff] 0.0
          %419 = vst [vmem:[#allocation2 + $0x30] sm:$0xff] 0.0
          %420 = vst [vmem:[#allocation2 + $0x38] sm:$0xff] 0.0
          %421 = vst [vmem:[#allocation2 + $0x40] sm:$0xff] 0.0
          %422 = vst [vmem:[#allocation2 + $0x48] sm:$0xff] 0.0
          %423 = vst [vmem:[#allocation2 + $0x50] sm:$0xff] 0.0
          %424 = vst [vmem:[#allocation2 + $0x58] sm:$0xff] 0.0
          %425 = vst [vmem:[#allocation2 + $0x60] sm:$0xff] 0.0
          %426 = vst [vmem:[#allocation2 + $0x68] sm:$0xff] 0.0
          %427 = vst [vmem:[#allocation2 + $0x70] sm:$0xff] 0.0
          %428 = vst [vmem:[#allocation2 + $0x78] sm:$0xff] 0.0
        $region60: #{tpu_custom_call.1} parent=39 // pred_fallthru
          _
        %v429 = vld [vmem:[#allocation2] sm:$0xff]
        %v430 = vld [vmem:[#allocation2 + $0x8] sm:$0xff]
        %v431 = vld [vmem:[#allocation2 + $0x10] sm:$0xff]
        %v432 = vld [vmem:[#allocation2 + $0x18] sm:$0xff]
        %v433 = vld [vmem:[#allocation2 + $0x20] sm:$0xff]
        %v434 = vld [vmem:[#allocation2 + $0x28] sm:$0xff]
        %v435 = vld [vmem:[#allocation2 + $0x30] sm:$0xff]
        %v436 = vld [vmem:[#allocation2 + $0x38] sm:$0xff]
        %v437 = vld [vmem:[#allocation2 + $0x40] sm:$0xff]
        %v438 = vld [vmem:[#allocation2 + $0x48] sm:$0xff]
        %v439 = vld [vmem:[#allocation2 + $0x50] sm:$0xff]
        %v440 = vld [vmem:[#allocation2 + $0x58] sm:$0xff]
        %v441 = vld [vmem:[#allocation2 + $0x60] sm:$0xff]
        %v442 = vld [vmem:[#allocation2 + $0x68] sm:$0xff]
        %v443 = vld [vmem:[#allocation2 + $0x70] sm:$0xff]
        %v444 = vld [vmem:[#allocation2 + $0x78] sm:$0xff]
        %v445 = vld [vmem:[%s328] sm:$0xff]
        %v446 = vld [vmem:[%s328 + $0x8] sm:$0xff]
        %v447 = vld [vmem:[%s328 + $0x10] sm:$0xff]
        %v448 = vld [vmem:[%s328 + $0x18] sm:$0xff]
        %v449 = vld [vmem:[%s328 + $0x20] sm:$0xff]
        %v450 = vld [vmem:[%s328 + $0x28] sm:$0xff]
        %v451 = vld [vmem:[%s328 + $0x30] sm:$0xff]
        %v452 = vld [vmem:[%s328 + $0x38] sm:$0xff]
        %v453 = vld [vmem:[%s328 + $0x40] sm:$0xff]
        %v454 = vld [vmem:[%s328 + $0x48] sm:$0xff]
        %v455 = vld [vmem:[%s328 + $0x50] sm:$0xff]
        %v456 = vld [vmem:[%s328 + $0x58] sm:$0xff]
        %v457 = vld [vmem:[%s328 + $0x60] sm:$0xff]
        %v458 = vld [vmem:[%s328 + $0x68] sm:$0xff]
        %v459 = vld [vmem:[%s328 + $0x70] sm:$0xff]
        %v460 = vld [vmem:[%s328 + $0x78] sm:$0xff]
        %v461 = vld [vmem:[%s337] sm:$0xf]
        %v462 = vld [vmem:[%s337 + $0x4] sm:$0xf]
        %v463 = vld [vmem:[%s337 + $0x8] sm:$0xf]
        %v464 = vld [vmem:[%s337 + $0xc] sm:$0xf]
        %v465 = vld [vmem:[%s337 + $0x10] sm:$0xf]
        %v466 = vld [vmem:[%s337 + $0x14] sm:$0xf]
        %v467 = vld [vmem:[%s337 + $0x18] sm:$0xf]
        %v468 = vld [vmem:[%s337 + $0x1c] sm:$0xf]
        %v469 = vld [vmem:[%s337 + $0x20] sm:$0xf]
        %v470 = vld [vmem:[%s337 + $0x24] sm:$0xf]
        %v471 = vld [vmem:[%s337 + $0x28] sm:$0xf]
        %v472 = vld [vmem:[%s337 + $0x2c] sm:$0xf]
        %v473 = vld [vmem:[%s337 + $0x30] sm:$0xf]
        %v474 = vld [vmem:[%s337 + $0x34] sm:$0xf]
        %v475 = vld [vmem:[%s337 + $0x38] sm:$0xf]
        %v476 = vld [vmem:[%s337 + $0x3c] sm:$0xf]
        %v477 = vld [vmem:[%s337 + $0x40] sm:$0xf]
        %v478 = vld [vmem:[%s337 + $0x44] sm:$0xf]
        %v479 = vld [vmem:[%s337 + $0x48] sm:$0xf]
        %v480 = vld [vmem:[%s337 + $0x4c] sm:$0xf]
        %v481 = vld [vmem:[%s337 + $0x50] sm:$0xf]
        %v482 = vld [vmem:[%s337 + $0x54] sm:$0xf]
        %v483 = vld [vmem:[%s337 + $0x58] sm:$0xf]
        %v484 = vld [vmem:[%s337 + $0x5c] sm:$0xf]
        %v485 = vld [vmem:[%s337 + $0x60] sm:$0xf]
        %v486 = vld [vmem:[%s337 + $0x64] sm:$0xf]
        %v487 = vld [vmem:[%s337 + $0x68] sm:$0xf]
        %v488 = vld [vmem:[%s337 + $0x6c] sm:$0xf]
        %v489 = vld [vmem:[%s337 + $0x70] sm:$0xf]
        %v490 = vld [vmem:[%s337 + $0x74] sm:$0xf]
        %v491 = vld [vmem:[%s337 + $0x78] sm:$0xf]
        %v492 = vld [vmem:[%s337 + $0x7c] sm:$0xf]
        %v509 = vunpack.c.l.b16 %v445
        %v510 = vunpack.c.h.b16 %v445
        %v511 = vunpack.c.l.b16 %v446
        %v512 = vunpack.c.h.b16 %v446
        %v513 = vunpack.c.l.b16 %v447
        %v514 = vunpack.c.h.b16 %v447
        %v515 = vunpack.c.l.b16 %v448
        %v516 = vunpack.c.h.b16 %v448
        %v517 = vunpack.c.l.b16 %v449
        %v518 = vunpack.c.h.b16 %v449
        %v519 = vunpack.c.l.b16 %v450
        %v520 = vunpack.c.h.b16 %v450
        %v521 = vunpack.c.l.b16 %v451
        %v522 = vunpack.c.h.b16 %v451
        %v523 = vunpack.c.l.b16 %v452
        %v524 = vunpack.c.h.b16 %v452
        %v525 = vunpack.c.l.b16 %v453
        %v526 = vunpack.c.h.b16 %v453
        %v527 = vunpack.c.l.b16 %v454
        %v528 = vunpack.c.h.b16 %v454
        %v529 = vunpack.c.l.b16 %v455
        %v530 = vunpack.c.h.b16 %v455
        %v531 = vunpack.c.l.b16 %v456
        %v532 = vunpack.c.h.b16 %v456
        %v533 = vunpack.c.l.b16 %v457
        %v534 = vunpack.c.h.b16 %v457
        %v535 = vunpack.c.l.b16 %v458
        %v536 = vunpack.c.h.b16 %v458
        %v537 = vunpack.c.l.b16 %v459
        %v538 = vunpack.c.h.b16 %v459
        %v539 = vunpack.c.l.b16 %v460
        %v540 = vunpack.c.h.b16 %v460
        %v541 = vpack.c.b16 %v511, %v509
        %v542 = vpack.c.b16 %v512, %v510
        %v543 = vpack.c.b16 %v515, %v513
        %v544 = vpack.c.b16 %v516, %v514
        %v545 = vpack.c.b16 %v519, %v517
        %v546 = vpack.c.b16 %v520, %v518
        %v547 = vpack.c.b16 %v523, %v521
        %v548 = vpack.c.b16 %v524, %v522
        %v549 = vpack.c.b16 %v527, %v525
        %v550 = vpack.c.b16 %v528, %v526
        %v551 = vpack.c.b16 %v531, %v529
        %v552 = vpack.c.b16 %v532, %v530
        %v553 = vpack.c.b16 %v535, %v533
        %v554 = vpack.c.b16 %v536, %v534
        %v555 = vpack.c.b16 %v539, %v537
        %v556 = vpack.c.b16 %v540, %v538
        %v605 = vunpack.c.l.b16 %v461
        %v606 = vunpack.c.l.b16 %v462
        %v607 = vunpack.c.l.b16 %v463
        %v608 = vunpack.c.l.b16 %v464
        %v609 = vunpack.c.l.b16 %v465
        %v610 = vunpack.c.l.b16 %v466
        %v611 = vunpack.c.l.b16 %v467
        %v612 = vunpack.c.l.b16 %v468
        %v613 = vunpack.c.l.b16 %v469
        %v614 = vunpack.c.l.b16 %v470
        %v615 = vunpack.c.l.b16 %v471
        %v616 = vunpack.c.l.b16 %v472
        %v617 = vunpack.c.l.b16 %v473
        %v618 = vunpack.c.l.b16 %v474
        %v619 = vunpack.c.l.b16 %v475
        %v620 = vunpack.c.l.b16 %v476
        %v621 = vunpack.c.l.b16 %v477
        %v622 = vunpack.c.l.b16 %v478
        %v623 = vunpack.c.l.b16 %v479
        %v624 = vunpack.c.l.b16 %v480
        %v625 = vunpack.c.l.b16 %v481
        %v626 = vunpack.c.l.b16 %v482
        %v627 = vunpack.c.l.b16 %v483
        %v628 = vunpack.c.l.b16 %v484
        %v629 = vunpack.c.l.b16 %v485
        %v630 = vunpack.c.l.b16 %v486
        %v631 = vunpack.c.l.b16 %v487
        %v632 = vunpack.c.l.b16 %v488
        %v633 = vunpack.c.l.b16 %v489
        %v634 = vunpack.c.l.b16 %v490
        %v635 = vunpack.c.l.b16 %v491
        %v636 = vunpack.c.l.b16 %v492
        %v637 = vpack.c.b16 %v606, %v605
        %v638 = vpack.c.b16 %v608, %v607
        %v639 = vpack.c.b16 %v610, %v609
        %v640 = vpack.c.b16 %v612, %v611
        %v641 = vpack.c.b16 %v614, %v613
        %v642 = vpack.c.b16 %v616, %v615
        %v643 = vpack.c.b16 %v618, %v617
        %v644 = vpack.c.b16 %v620, %v619
        %v645 = vpack.c.b16 %v622, %v621
        %v646 = vpack.c.b16 %v624, %v623
        %v647 = vpack.c.b16 %v626, %v625
        %v648 = vpack.c.b16 %v628, %v627
        %v649 = vpack.c.b16 %v630, %v629
        %v650 = vpack.c.b16 %v632, %v631
        %v651 = vpack.c.b16 %v634, %v633
        %v652 = vpack.c.b16 %v636, %v635
        %669 = vmatprep.subr.bf16.mxu0 0
        %670 = vmatpush1.bf16.msra.mxu0 %v637
        %671 = vmatprep.subr.bf16.mxu0 0
        %672 = vmatpush1.bf16.msra.mxu0 %v638
        %673 = vmatprep.subr.bf16.mxu0 0
        %674 = vmatpush1.bf16.msra.mxu0 %v639
        %675 = vmatprep.subr.bf16.mxu0 0
        %676 = vmatpush1.bf16.msra.mxu0 %v640
        %677 = vmatprep.subr.bf16.mxu0 0
        %678 = vmatpush1.bf16.msra.mxu0 %v641
        %679 = vmatprep.subr.bf16.mxu0 0
        %680 = vmatpush1.bf16.msra.mxu0 %v642
        %681 = vmatprep.subr.bf16.mxu0 0
        %682 = vmatpush1.bf16.msra.mxu0 %v643
        %683 = vmatprep.subr.bf16.mxu0 0
        %684 = vmatpush1.bf16.msra.mxu0 %v644
        %685 = vmatprep.subr.bf16.mxu0 0
        %686 = vmatpush1.bf16.msra.mxu0 %v645
        %687 = vmatprep.subr.bf16.mxu0 0
        %688 = vmatpush1.bf16.msra.mxu0 %v646
        %689 = vmatprep.subr.bf16.mxu0 0
        %690 = vmatpush1.bf16.msra.mxu0 %v647
        %691 = vmatprep.subr.bf16.mxu0 0
        %692 = vmatpush1.bf16.msra.mxu0 %v648
        %693 = vmatprep.subr.bf16.mxu0 0
        %694 = vmatpush1.bf16.msra.mxu0 %v649
        %695 = vmatprep.subr.bf16.mxu0 0
        %696 = vmatpush1.bf16.msra.mxu0 %v650
        %697 = vmatprep.subr.bf16.mxu0 0
        %698 = vmatpush1.bf16.msra.mxu0 %v651
        %699 = vmatprep.subr.bf16.mxu0 0
        %700 = vmatpush1.bf16.msra.mxu0 %v652
        %701 = vmatprep.mubr.bf16.mxu0 %v542
        %702 = vmatmul.mubr.bf16.gmra.mrb[0].mxu0 %v541
        %v703 = vpop.f32.mrb[0].mxu0
        %v704 = vadd.f32 0.0, %v703
        %v705 = vpop.f32.mrb[0].mxu0
        %v706 = vpop.f32.mrb[0].mxu0
        %v707 = vadd.f32 0.0, %v706
        %v708 = vpop.f32.mrb[0].mxu0
        %709 = vmatprep.mubr.bf16.mxu0 %v544
        %710 = vmatmul.mubr.bf16.gmra.mrb[0].mxu0 %v543
        %v711 = vpop.f32.mrb[0].mxu0
        %v712 = vadd.f32 0.0, %v711
        %v713 = vpop.f32.mrb[0].mxu0
        %v714 = vpop.f32.mrb[0].mxu0
        %v715 = vadd.f32 0.0, %v714
        %v716 = vpop.f32.mrb[0].mxu0
        %717 = vmatprep.mubr.bf16.mxu0 %v546
        %718 = vmatmul.mubr.bf16.gmra.mrb[0].mxu0 %v545
        %v719 = vpop.f32.mrb[0].mxu0
        %v720 = vadd.f32 0.0, %v719
        %v721 = vpop.f32.mrb[0].mxu0
        %v722 = vpop.f32.mrb[0].mxu0
        %v723 = vadd.f32 0.0, %v722
        %v724 = vpop.f32.mrb[0].mxu0
        %725 = vmatprep.mubr.bf16.mxu0 %v548
        %726 = vmatmul.mubr.bf16.gmra.mrb[0].mxu0 %v547
        %v727 = vpop.f32.mrb[0].mxu0
        %v728 = vadd.f32 0.0, %v727
        %v729 = vpop.f32.mrb[0].mxu0
        %v730 = vpop.f32.mrb[0].mxu0
        %v731 = vadd.f32 0.0, %v730
        %v732 = vpop.f32.mrb[0].mxu0
        %733 = vmatprep.mubr.bf16.mxu0 %v550
        %734 = vmatmul.mubr.bf16.gmra.mrb[0].mxu0 %v549
        %v735 = vpop.f32.mrb[0].mxu0
        %v736 = vadd.f32 0.0, %v735
        %v737 = vpop.f32.mrb[0].mxu0
        %v738 = vpop.f32.mrb[0].mxu0
        %v739 = vadd.f32 0.0, %v738
        %v740 = vpop.f32.mrb[0].mxu0
        %741 = vmatprep.mubr.bf16.mxu0 %v552
        %742 = vmatmul.mubr.bf16.gmra.mrb[0].mxu0 %v551
        %v743 = vpop.f32.mrb[0].mxu0
        %v744 = vadd.f32 0.0, %v743
        %v745 = vpop.f32.mrb[0].mxu0
        %v746 = vpop.f32.mrb[0].mxu0
        %v747 = vadd.f32 0.0, %v746
        %v748 = vpop.f32.mrb[0].mxu0
        %749 = vmatprep.mubr.bf16.mxu0 %v554
        %750 = vmatmul.mubr.bf16.gmra.mrb[0].mxu0 %v553
        %v751 = vpop.f32.mrb[0].mxu0
        %v752 = vadd.f32 0.0, %v751
        %v753 = vpop.f32.mrb[0].mxu0
        %v754 = vpop.f32.mrb[0].mxu0
        %v755 = vadd.f32 0.0, %v754
        %v756 = vpop.f32.mrb[0].mxu0
        %757 = vmatprep.mubr.bf16.mxu0 %v556
        %758 = vmatmul.mubr.bf16.gmra.mrb[0].mxu0 %v555
        %v759 = vpop.f32.mrb[0].mxu0
        %v760 = vadd.f32 0.0, %v759
        %v761 = vpop.f32.mrb[0].mxu0
        %v762 = vpop.f32.mrb[0].mxu0
        %v763 = vadd.f32 0.0, %v762
        %v764 = vpop.f32.mrb[0].mxu0
        %765 = vdwg.mxu0
        %v766 = vadd.f32 %v429, %v704
        %v767 = vadd.f32 %v430, %v707
        %v768 = vadd.f32 %v431, %v712
        %v769 = vadd.f32 %v432, %v715
        %v770 = vadd.f32 %v433, %v720
        %v771 = vadd.f32 %v434, %v723
        %v772 = vadd.f32 %v435, %v728
        %v773 = vadd.f32 %v436, %v731
        %v774 = vadd.f32 %v437, %v736
        %v775 = vadd.f32 %v438, %v739
        %v776 = vadd.f32 %v439, %v744
        %v777 = vadd.f32 %v440, %v747
        %v778 = vadd.f32 %v441, %v752
        %v779 = vadd.f32 %v442, %v755
        %v780 = vadd.f32 %v443, %v760
        %v781 = vadd.f32 %v444, %v763
        %782 = vst [vmem:[#allocation2] sm:$0xff] %v766
        %783 = vst [vmem:[#allocation2 + $0x8] sm:$0xff] %v767
        %784 = vst [vmem:[#allocation2 + $0x10] sm:$0xff] %v768
        %785 = vst [vmem:[#allocation2 + $0x18] sm:$0xff] %v769
        %786 = vst [vmem:[#allocation2 + $0x20] sm:$0xff] %v770
        %787 = vst [vmem:[#allocation2 + $0x28] sm:$0xff] %v771
        %788 = vst [vmem:[#allocation2 + $0x30] sm:$0xff] %v772
        %789 = vst [vmem:[#allocation2 + $0x38] sm:$0xff] %v773
        %790 = vst [vmem:[#allocation2 + $0x40] sm:$0xff] %v774
        %791 = vst [vmem:[#allocation2 + $0x48] sm:$0xff] %v775
        %792 = vst [vmem:[#allocation2 + $0x50] sm:$0xff] %v776
        %793 = vst [vmem:[#allocation2 + $0x58] sm:$0xff] %v777
        %794 = vst [vmem:[#allocation2 + $0x60] sm:$0xff] %v778
        %795 = vst [vmem:[#allocation2 + $0x68] sm:$0xff] %v779
        %796 = vst [vmem:[#allocation2 + $0x70] sm:$0xff] %v780
        %797 = vst [vmem:[#allocation2 + $0x78] sm:$0xff] %v781
        %p798 = scmp.eq.s32.totalorder %s35, 1
        // Predicated region
        $region61: #{tpu_custom_call.1} parent=39 // pred_check
          %p799 = pneg %p798
        $region62: #{tpu_custom_call.1} parent=39 // pred_check_branch
          %801 = sbr.rel (%p799) target = $region64
        $region63: #{tpu_custom_call.1} parent=39 // pred_region
          %v802 = vld [vmem:[%s346] sm:$0xf]
          %v803 = vld [vmem:[%s346 + $0x4] sm:$0xf]
          %v804 = vld [vmem:[%s346 + $0x8] sm:$0xf]
          %v805 = vld [vmem:[%s346 + $0xc] sm:$0xf]
          %v806 = vld [vmem:[%s346 + $0x10] sm:$0xf]
          %v807 = vld [vmem:[%s346 + $0x14] sm:$0xf]
          %v808 = vld [vmem:[%s346 + $0x18] sm:$0xf]
          %v809 = vld [vmem:[%s346 + $0x1c] sm:$0xf]
          %v810 = vld [vmem:[%s346 + $0x20] sm:$0xf]
          %v811 = vld [vmem:[%s346 + $0x24] sm:$0xf]
          %v812 = vld [vmem:[%s346 + $0x28] sm:$0xf]
          %v813 = vld [vmem:[%s346 + $0x2c] sm:$0xf]
          %v814 = vld [vmem:[%s346 + $0x30] sm:$0xf]
          %v815 = vld [vmem:[%s346 + $0x34] sm:$0xf]
          %v816 = vld [vmem:[%s346 + $0x38] sm:$0xf]
          %v817 = vld [vmem:[%s346 + $0x3c] sm:$0xf]
          %v818 = vld [vmem:[%s355] sm:$0xf]
          %v819 = vld [vmem:[%s355 + $0x4] sm:$0xf]
          %v820 = vld [vmem:[%s355 + $0x8] sm:$0xf]
          %v821 = vld [vmem:[%s355 + $0xc] sm:$0xf]
          %v822 = vld [vmem:[%s355 + $0x10] sm:$0xf]
          %v823 = vld [vmem:[%s355 + $0x14] sm:$0xf]
          %v824 = vld [vmem:[%s355 + $0x18] sm:$0xf]
          %v825 = vld [vmem:[%s355 + $0x1c] sm:$0xf]
          %v826 = vld [vmem:[%s355 + $0x20] sm:$0xf]
          %v827 = vld [vmem:[%s355 + $0x24] sm:$0xf]
          %v828 = vld [vmem:[%s355 + $0x28] sm:$0xf]
          %v829 = vld [vmem:[%s355 + $0x2c] sm:$0xf]
          %v830 = vld [vmem:[%s355 + $0x30] sm:$0xf]
          %v831 = vld [vmem:[%s355 + $0x34] sm:$0xf]
          %v832 = vld [vmem:[%s355 + $0x38] sm:$0xf]
          %v833 = vld [vmem:[%s355 + $0x3c] sm:$0xf]
          %v850 = vunpack.c.l.b16 %v802
          %v851 = vunpack.c.l.b16 %v803
          %v852 = vunpack.c.l.b16 %v804
          %v853 = vunpack.c.l.b16 %v805
          %v854 = vunpack.c.l.b16 %v806
          %v855 = vunpack.c.l.b16 %v807
          %v856 = vunpack.c.l.b16 %v808
          %v857 = vunpack.c.l.b16 %v809
          %v858 = vunpack.c.l.b16 %v810
          %v859 = vunpack.c.l.b16 %v811
          %v860 = vunpack.c.l.b16 %v812
          %v861 = vunpack.c.l.b16 %v813
          %v862 = vunpack.c.l.b16 %v814
          %v863 = vunpack.c.l.b16 %v815
          %v864 = vunpack.c.l.b16 %v816
          %v865 = vunpack.c.l.b16 %v817
          %v866 = vpack.c.b16 %v851, %v850
          %v867 = vpack.c.b16 %v853, %v852
          %v868 = vpack.c.b16 %v855, %v854
          %v869 = vpack.c.b16 %v857, %v856
          %v870 = vpack.c.b16 %v859, %v858
          %v871 = vpack.c.b16 %v861, %v860
          %v872 = vpack.c.b16 %v863, %v862
          %v873 = vpack.c.b16 %v865, %v864
          %v898 = vunpack.c.l.b16 %v818
          %v899 = vunpack.c.l.b16 %v819
          %v900 = vunpack.c.l.b16 %v820
          %v901 = vunpack.c.l.b16 %v821
          %v902 = vunpack.c.l.b16 %v822
          %v903 = vunpack.c.l.b16 %v823
          %v904 = vunpack.c.l.b16 %v824
          %v905 = vunpack.c.l.b16 %v825
          %v906 = vunpack.c.l.b16 %v826
          %v907 = vunpack.c.l.b16 %v827
          %v908 = vunpack.c.l.b16 %v828
          %v909 = vunpack.c.l.b16 %v829
          %v910 = vunpack.c.l.b16 %v830
          %v911 = vunpack.c.l.b16 %v831
          %v912 = vunpack.c.l.b16 %v832
          %v913 = vunpack.c.l.b16 %v833
          %v914 = vpack.c.b16 %v899, %v898
          %v915 = vpack.c.b16 %v901, %v900
          %v916 = vpack.c.b16 %v903, %v902
          %v917 = vpack.c.b16 %v905, %v904
          %v918 = vpack.c.b16 %v907, %v906
          %v919 = vpack.c.b16 %v909, %v908
          %v920 = vpack.c.b16 %v911, %v910
          %v921 = vpack.c.b16 %v913, %v912
          %930 = vmatprep.subr.bf16.mxu0 0
          %931 = vmatpush1.bf16.msra.mxu0 %v914
          %932 = vmatprep.subr.bf16.mxu0 0
          %933 = vmatpush1.bf16.msra.mxu0 %v915
          %934 = vmatprep.subr.bf16.mxu0 0
          %935 = vmatpush1.bf16.msra.mxu0 %v916
          %936 = vmatprep.subr.bf16.mxu0 0
          %937 = vmatpush1.bf16.msra.mxu0 %v917
          %938 = vmatprep.subr.bf16.mxu0 0
          %939 = vmatpush1.bf16.msra.mxu0 %v918
          %940 = vmatprep.subr.bf16.mxu0 0
          %941 = vmatpush1.bf16.msra.mxu0 %v919
          %942 = vmatprep.subr.bf16.mxu0 0
          %943 = vmatpush1.bf16.msra.mxu0 %v920
          %944 = vmatprep.subr.bf16.mxu0 0
          %945 = vmatpush1.bf16.msra.mxu0 %v921
          %946 = vmatprep.subr.bf16.mxu0 0
          %947 = vmatpush1.bf16.msra.mxu0 0
          %948 = vmatprep.subr.bf16.mxu0 0
          %949 = vmatpush1.bf16.msra.mxu0 0
          %950 = vmatprep.subr.bf16.mxu0 0
          %951 = vmatpush1.bf16.msra.mxu0 0
          %952 = vmatprep.subr.bf16.mxu0 0
          %953 = vmatpush1.bf16.msra.mxu0 0
          %954 = vmatprep.subr.bf16.mxu0 0
          %955 = vmatpush1.bf16.msra.mxu0 0
          %956 = vmatprep.subr.bf16.mxu0 0
          %957 = vmatpush1.bf16.msra.mxu0 0
          %958 = vmatprep.subr.bf16.mxu0 0
          %959 = vmatpush1.bf16.msra.mxu0 0
          %960 = vmatprep.subr.bf16.mxu0 0
          %961 = vmatpush1.bf16.msra.mxu0 0
          %962 = vmatprep.mubr.bf16.mxu0 0
          %963 = vmatmul.mubr.bf16.gmra.mrb[0].mxu0 %v866
          %v964 = vpop.f32.mrb[0].mxu0
          %v965 = vadd.f32 0.0, %v964
          %v966 = vpop.f32.mrb[0].mxu0
          %v967 = vpop.f32.mrb[0].mxu0
          %v968 = vadd.f32 0.0, %v967
          %v969 = vpop.f32.mrb[0].mxu0
          %970 = vmatprep.mubr.bf16.mxu0 0
          %971 = vmatmul.mubr.bf16.gmra.mrb[0].mxu0 %v867
          %v972 = vpop.f32.mrb[0].mxu0
          %v973 = vadd.f32 0.0, %v972
          %v974 = vpop.f32.mrb[0].mxu0
          %v975 = vpop.f32.mrb[0].mxu0
          %v976 = vadd.f32 0.0, %v975
          %v977 = vpop.f32.mrb[0].mxu0
          %978 = vmatprep.mubr.bf16.mxu0 0
          %979 = vmatmul.mubr.bf16.gmra.mrb[0].mxu0 %v868
          %v980 = vpop.f32.mrb[0].mxu0
          %v981 = vadd.f32 0.0, %v980
          %v982 = vpop.f32.mrb[0].mxu0
          %v983 = vpop.f32.mrb[0].mxu0
          %v984 = vadd.f32 0.0, %v983
          %v985 = vpop.f32.mrb[0].mxu0
          %986 = vmatprep.mubr.bf16.mxu0 0
          %987 = vmatmul.mubr.bf16.gmra.mrb[0].mxu0 %v869
          %v988 = vpop.f32.mrb[0].mxu0
          %v989 = vadd.f32 0.0, %v988
          %v990 = vpop.f32.mrb[0].mxu0
          %v991 = vpop.f32.mrb[0].mxu0
          %v992 = vadd.f32 0.0, %v991
          %v993 = vpop.f32.mrb[0].mxu0
          %994 = vmatprep.mubr.bf16.mxu0 0
          %995 = vmatmul.mubr.bf16.gmra.mrb[0].mxu0 %v870
          %v996 = vpop.f32.mrb[0].mxu0
          %v997 = vadd.f32 0.0, %v996
          %v998 = vpop.f32.mrb[0].mxu0
          %v999 = vpop.f32.mrb[0].mxu0
          %v1000 = vadd.f32 0.0, %v999
          %v1001 = vpop.f32.mrb[0].mxu0
          %1002 = vmatprep.mubr.bf16.mxu0 0
          %1003 = vmatmul.mubr.bf16.gmra.mrb[0].mxu0 %v871
          %v1004 = vpop.f32.mrb[0].mxu0
          %v1005 = vadd.f32 0.0, %v1004
          %v1006 = vpop.f32.mrb[0].mxu0
          %v1007 = vpop.f32.mrb[0].mxu0
          %v1008 = vadd.f32 0.0, %v1007
          %v1009 = vpop.f32.mrb[0].mxu0
          %1010 = vmatprep.mubr.bf16.mxu0 0
          %1011 = vmatmul.mubr.bf16.gmra.mrb[0].mxu0 %v872
          %v1012 = vpop.f32.mrb[0].mxu0
          %v1013 = vadd.f32 0.0, %v1012
          %v1014 = vpop.f32.mrb[0].mxu0
          %v1015 = vpop.f32.mrb[0].mxu0
          %v1016 = vadd.f32 0.0, %v1015
          %v1017 = vpop.f32.mrb[0].mxu0
          %1018 = vmatprep.mubr.bf16.mxu0 0
          %1019 = vmatmul.mubr.bf16.gmra.mrb[0].mxu0 %v873
          %v1020 = vpop.f32.mrb[0].mxu0
          %v1021 = vadd.f32 0.0, %v1020
          %v1022 = vpop.f32.mrb[0].mxu0
          %v1023 = vpop.f32.mrb[0].mxu0
          %v1024 = vadd.f32 0.0, %v1023
          %v1025 = vpop.f32.mrb[0].mxu0
          %1026 = vdwg.mxu0
          %v1027 = vld [vmem:[#allocation2] sm:$0xff]
          %v1028 = vld [vmem:[#allocation2 + $0x8] sm:$0xff]
          %v1029 = vld [vmem:[#allocation2 + $0x10] sm:$0xff]
          %v1030 = vld [vmem:[#allocation2 + $0x18] sm:$0xff]
          %v1031 = vld [vmem:[#allocation2 + $0x20] sm:$0xff]
          %v1032 = vld [vmem:[#allocation2 + $0x28] sm:$0xff]
          %v1033 = vld [vmem:[#allocation2 + $0x30] sm:$0xff]
          %v1034 = vld [vmem:[#allocation2 + $0x38] sm:$0xff]
          %v1035 = vld [vmem:[#allocation2 + $0x40] sm:$0xff]
          %v1036 = vld [vmem:[#allocation2 + $0x48] sm:$0xff]
          %v1037 = vld [vmem:[#allocation2 + $0x50] sm:$0xff]
          %v1038 = vld [vmem:[#allocation2 + $0x58] sm:$0xff]
          %v1039 = vld [vmem:[#allocation2 + $0x60] sm:$0xff]
          %v1040 = vld [vmem:[#allocation2 + $0x68] sm:$0xff]
          %v1041 = vld [vmem:[#allocation2 + $0x70] sm:$0xff]
          %v1042 = vld [vmem:[#allocation2 + $0x78] sm:$0xff]
          %v1043 = vld [vmem:[%s406] sm:$0x1]
          %v1045 = vlaneseq
          %v1046 = vshrl.u32 %v1045, 7
          %v1047 = vsub.s32 0, %v1046
          %v1048 = vrot.slane %v1043, %v1047
          %v1050 = vadd.f32 %v1027, %v1048
          %v1051 = vadd.f32 %v1028, %v1048
          %v1052 = vadd.f32 %v1029, %v1048
          %v1053 = vadd.f32 %v1030, %v1048
          %v1054 = vadd.f32 %v1031, %v1048
          %v1055 = vadd.f32 %v1032, %v1048
          %v1056 = vadd.f32 %v1033, %v1048
          %v1057 = vadd.f32 %v1034, %v1048
          %v1058 = vadd.f32 %v1035, %v1048
          %v1059 = vadd.f32 %v1036, %v1048
          %v1060 = vadd.f32 %v1037, %v1048
          %v1061 = vadd.f32 %v1038, %v1048
          %v1062 = vadd.f32 %v1039, %v1048
          %v1063 = vadd.f32 %v1040, %v1048
          %v1064 = vadd.f32 %v1041, %v1048
          %v1065 = vadd.f32 %v1042, %v1048
          %v1066 = vadd.f32 %v1050, %v965
          %v1067 = vadd.f32 %v1051, %v968
          %v1068 = vadd.f32 %v1052, %v973
          %v1069 = vadd.f32 %v1053, %v976
          %v1070 = vadd.f32 %v1054, %v981
          %v1071 = vadd.f32 %v1055, %v984
          %v1072 = vadd.f32 %v1056, %v989
          %v1073 = vadd.f32 %v1057, %v992
          %v1074 = vadd.f32 %v1058, %v997
          %v1075 = vadd.f32 %v1059, %v1000
          %v1076 = vadd.f32 %v1060, %v1005
          %v1077 = vadd.f32 %v1061, %v1008
          %v1078 = vadd.f32 %v1062, %v1013
          %v1079 = vadd.f32 %v1063, %v1016
          %v1080 = vadd.f32 %v1064, %v1021
          %v1081 = vadd.f32 %v1065, %v1024
          %v1082 = vpack.c.bf16 %v1067, %v1066
          %v1083 = vpack.c.bf16 %v1069, %v1068
          %v1084 = vpack.c.bf16 %v1071, %v1070
          %v1085 = vpack.c.bf16 %v1073, %v1072
          %v1086 = vpack.c.bf16 %v1075, %v1074
          %v1087 = vpack.c.bf16 %v1077, %v1076
          %v1088 = vpack.c.bf16 %v1079, %v1078
          %v1089 = vpack.c.bf16 %v1081, %v1080
          %v1098 = vunpack.c.l.b16 %v1082
          %v1099 = vunpack.c.h.b16 %v1082
          %v1100 = vunpack.c.l.b16 %v1083
          %v1101 = vunpack.c.h.b16 %v1083
          %v1102 = vunpack.c.l.b16 %v1084
          %v1103 = vunpack.c.h.b16 %v1084
          %v1104 = vunpack.c.l.b16 %v1085
          %v1105 = vunpack.c.h.b16 %v1085
          %v1106 = vunpack.c.l.b16 %v1086
          %v1107 = vunpack.c.h.b16 %v1086
          %v1108 = vunpack.c.l.b16 %v1087
          %v1109 = vunpack.c.h.b16 %v1087
          %v1110 = vunpack.c.l.b16 %v1088
          %v1111 = vunpack.c.h.b16 %v1088
          %v1112 = vunpack.c.l.b16 %v1089
          %v1113 = vunpack.c.h.b16 %v1089
          %v1114 = vpack.c.b16 %v1098, %v1098
          %v1115 = vpack.c.b16 %v1099, %v1099
          %v1116 = vpack.c.b16 %v1100, %v1100
          %v1117 = vpack.c.b16 %v1101, %v1101
          %v1118 = vpack.c.b16 %v1102, %v1102
          %v1119 = vpack.c.b16 %v1103, %v1103
          %v1120 = vpack.c.b16 %v1104, %v1104
          %v1121 = vpack.c.b16 %v1105, %v1105
          %v1122 = vpack.c.b16 %v1106, %v1106
          %v1123 = vpack.c.b16 %v1107, %v1107
          %v1124 = vpack.c.b16 %v1108, %v1108
          %v1125 = vpack.c.b16 %v1109, %v1109
          %v1126 = vpack.c.b16 %v1110, %v1110
          %v1127 = vpack.c.b16 %v1111, %v1111
          %v1128 = vpack.c.b16 %v1112, %v1112
          %v1129 = vpack.c.b16 %v1113, %v1113
          %1146 = vst [vmem:[%s399] sm:$0xf] %v1114
          %1147 = vst [vmem:[%s399 + $0x4] sm:$0xf] %v1115
          %1148 = vst [vmem:[%s399 + $0x8] sm:$0xf] %v1116
          %1149 = vst [vmem:[%s399 + $0xc] sm:$0xf] %v1117
          %1150 = vst [vmem:[%s399 + $0x10] sm:$0xf] %v1118
          %1151 = vst [vmem:[%s399 + $0x14] sm:$0xf] %v1119
          %1152 = vst [vmem:[%s399 + $0x18] sm:$0xf] %v1120
          %1153 = vst [vmem:[%s399 + $0x1c] sm:$0xf] %v1121
          %1154 = vst [vmem:[%s399 + $0x20] sm:$0xf] %v1122
          %1155 = vst [vmem:[%s399 + $0x24] sm:$0xf] %v1123
          %1156 = vst [vmem:[%s399 + $0x28] sm:$0xf] %v1124
          %1157 = vst [vmem:[%s399 + $0x2c] sm:$0xf] %v1125
          %1158 = vst [vmem:[%s399 + $0x30] sm:$0xf] %v1126
          %1159 = vst [vmem:[%s399 + $0x34] sm:$0xf] %v1127
          %1160 = vst [vmem:[%s399 + $0x38] sm:$0xf] %v1128
          %1161 = vst [vmem:[%s399 + $0x3c] sm:$0xf] %v1129
        $region64: #{tpu_custom_call.1} parent=39 // pred_fallthru
          _
        %s1162 = sand.u32 %s191, 1
        %s1163 = scalar_lea.sflag [#allocation5], %s1162
        %s1164 = sand.u32 %s191, 1
        %s1165 = smul.addr %s1164, 64
        %s1166 = scalar_lea.vmem [#allocation11], %s1165
        // Predicated region
        $region65: #{tpu_custom_call.1} parent=39 // pred_check
          %p1167 = pneg %p201
        $region66: #{tpu_custom_call.1} parent=39 // pred_check_branch
          %1169 = sbr.rel (%p1167) target = $region68
        $region67: #{tpu_custom_call.1} parent=39 // pred_region
          %s1170 = smul.u32 16, %s33
          %s1172 = ssub.s32 1024, 1024
          %1173 = vsyncadd %s1163, %s1172
          %s1174 = smul.addr %s1170, 2
          %s1175 = sadd.s32 %s34, %s1174
          %s1176 = smul.addr %s1175, 64
          %s1177 = scalar_lea.hbm %s5, %s1176
          %s1178 = sshll.u32 %s1166, 4
          %s1179 = int_to_ptr.vmem [resolvable:$true] %s1178
          %1184 = dma.vmem_to_hbm [thread:$0]  %s1179, 1024, %s1177, %s1163, 64, 128, 4
        $region68: #{tpu_custom_call.1} parent=39 // pred_fallthru
          _
      $region40: #{tpu_custom_call.1} parent=5 // pred_fallthru
        _
      %p1185 = scmp.le.s32.totalorder 2, %s23
      // Predicated region
      $region69: #{tpu_custom_call.1} parent=5 // pred_check
        %p1186 = pneg %p1185
      $region70: #{tpu_custom_call.1} parent=5 // pred_check_branch
        %1188 = sbr.rel (%p1186) target = $region72
      $region71: #{tpu_custom_call.1} parent=5 // pred_region
        %s1189 = ssub.s32 %s23, 2
        // Predicated region
        $region73: #{tpu_custom_call.1} parent=71 // pred_check
          %p1190 = pneg %p207
        $region74: #{tpu_custom_call.1} parent=71 // pred_check_branch
          %1192 = sbr.rel (%p1190) target = $region76
        $region75: #{tpu_custom_call.1} parent=71 // pred_region
          %s1193 = sand.u32 %s192, 1
          %s1194 = scalar_lea.sflag [#allocation5], %s1193
          %s1195 = sand.u32 %s192, 1
          %s1196 = smul.addr %s1195, 64
          %s1197 = scalar_lea.vmem [#allocation11], %s1196
          %1198 = dma.done %s1194, 1024
        $region76: #{tpu_custom_call.1} parent=71 // pred_fallthru
          _
      $region72: #{tpu_custom_call.1} parent=5 // pred_fallthru
        _
    $region6: #{tpu_custom_call.1} parent=1 // loop_footer
      %s27 = sadd.s32 1, %s23
    $region7: #{tpu_custom_call.1} parent=1 // loop_footer_branch
      %22 = sbr.rel target = $region3
    $region8: #{tpu_custom_call.1} parent=1 // loop_exit
      _
    %1199 = vsyncpa [#allocation4], 1
    %s1200 = scalar_lea.sflag [#allocation4], 1
    %1201 = vsyncpa %s1200, 1
    %1202 = vsyncpa [#allocation7], 1
    %s1203 = scalar_lea.sflag [#allocation7], 1
    %1204 = vsyncpa %s1203, 1
    %1205 = vsyncpa [#allocation10], 1
    %s1206 = scalar_lea.sflag [#allocation10], 1
    %1207 = vsyncpa %s1206, 1
    %1208 = vsyncpa [#allocation5], 1
    %s1209 = scalar_lea.sflag [#allocation5], 1
    %1210 = vsyncpa %s1209, 1

</llo_original>
